<compile_context>
chip_gen: v7x
topology: tpu7x:2x2x1
jax: 0.10.0
libtpu: 0.0.40
codegen_flags: <defaults>
</compile_context>

<pallas_src>
import jax
import jax.numpy as jnp
from jax.experimental import pallas as pl
from jax.experimental.pallas import tpu as pltpu


def _copy_kernel(x_ref, o_ref):
    # Lane-dense, unmasked tile copy (no reshape inside the kernel).
    o_ref[...] = x_ref[...]


def pixel_shuffle_cs(x, scale, spatial_dim):
    """JAX/Pallas equivalent of PixelShuffleCS.forward. x is NCHW."""
    N, C, H, W = x.shape
    assert C % scale == 0, "C must be divisible by scale"
    out_C = C // scale
    if spatial_dim == "H":
        out_shape = (N, out_C, H * scale, W)
    else:
        out_shape = (N, out_C, H, W * scale)

    total = N * C * H * W
    itemsize = jnp.dtype(x.dtype).itemsize

    # Pick a lane-dense flat factorization (R, L): L a large multiple of 128.
    L = 0
    for cand in (4096, 2048, 1024, 512, 256, 128):
        if total % cand == 0:
            L = cand
            break
    if L == 0:
        # Element count not a multiple of 128: the op is a metadata-only
        # contiguous reshape anyway, so take the zero-copy path.
        return x.reshape(out_shape)

    R = total // L

    # ~2 MiB input tiles: big enough to amortize the ~0.35 us/step pipeline
    # overhead, small enough for every TPU generation's scoped-VMEM default.
    target_bytes = 2 * 1024 * 1024
    rows_per_tile = max(1, target_bytes // (L * itemsize))
    if rows_per_tile >= R or R <= 8:
        r_tile = R                                   # full extent: always legal
    else:
        r_tile = max(8, (min(rows_per_tile, R) // 8) * 8)   # sublane-aligned

    grid = (pl.cdiv(R, r_tile),)

    flat_out = pl.pallas_call(
        _copy_kernel,
        out_shape=jax.ShapeDtypeStruct((R, L), x.dtype),
        grid=grid,
        in_specs=[pl.BlockSpec((r_tile, L), lambda i: (i, 0))],
        out_specs=pl.BlockSpec((r_tile, L), lambda i: (i, 0)),
        compiler_params=pltpu.CompilerParams(
            dimension_semantics=("parallel",)),
        cost_estimate=pl.CostEstimate(
            flops=0, transcendentals=0, bytes_accessed=2 * total * itemsize),
    )(x.reshape(R, L))          # wrapper-side reshape: metadata only

    return flat_out.reshape(out_shape)   # metadata only


def _reference(x, scale, spatial_dim):
    N, C, H, W = x.shape
    out_C = C // scale
    if spatial_dim == "H":
        return x.reshape(N, out_C, H * scale, W)
    return x.reshape(N, out_C, H, W * scale)


if __name__ == "__main__":
    key = jax.random.PRNGKey(0)
    N, C, H, W = 2, 4, 16, 16
    scale = 2
    x = jax.random.normal(key, (N, C, H, W), dtype=jnp.float32)

    # spatial_dim == 'H'
    out_h = pixel_shuffle_cs(x, scale, "H")
    jax.block_until_ready(out_h)
    ref_h = _reference(x, scale, "H")
    assert out_h.shape == (N, C // scale, H * scale, W)
    assert jnp.array_equal(out_h, ref_h), "mismatch for spatial_dim='H'"

    # spatial_dim == 'W'
    out_w = pixel_shuffle_cs(x, scale, "W")
    jax.block_until_ready(out_w)
    ref_w = _reference(x, scale, "W")
    assert out_w.shape == (N, C // scale, H, W * scale)
    assert jnp.array_equal(out_w, ref_w), "mismatch for spatial_dim='W'"

    # odd-sized input exercises the zero-copy fallback (total % 128 != 0)
    x_odd = jax.random.normal(key, (1, 2, 3, 5), dtype=jnp.float32)
    out_odd = pixel_shuffle_cs(x_odd, 2, "H")
    jax.block_until_ready(out_odd)
    assert jnp.array_equal(out_odd, _reference(x_odd, 2, "H"))

    print("KERNEL_OK")
</pallas_src>

<mosaic_0001>
module attributes {stable_mosaic.version = 11 : i64} {
  func.func @_copy_kernel(%arg0: i32, %arg1: memref<1x2048xf32, #tpu.memory_space<vmem>>, %arg2: memref<1x2048xf32, #tpu.memory_space<vmem>>) attributes {dimension_semantics = [#tpu.dimension_semantics<parallel>], iteration_bounds = array<i64: 1>, scalar_prefetch = 0 : i64, scratch_operands = 0 : i64, tpu.core_type = #tpu.core_type<tc>, window_params = [{transform_indices = @transform_0, window_bounds = array<i64: 1, 2048>}, {transform_indices = @transform_1, window_bounds = array<i64: 1, 2048>}]} {
    %c0 = arith.constant 0 : index
    %c0_0 = arith.constant 0 : index
    %0 = vector.load %arg1[%c0, %c0_0] : memref<1x2048xf32, #tpu.memory_space<vmem>>, vector<1x2048xf32>
    %c0_1 = arith.constant 0 : index
    %c0_2 = arith.constant 0 : index
    %1 = vector.load %arg2[%c0_1, %c0_2] : memref<1x2048xf32, #tpu.memory_space<vmem>>, vector<1x2048xf32>
    tpu.vector_store %arg2[%c0_1, %c0_2], %0 {strides = array<i32>} : memref<1x2048xf32, #tpu.memory_space<vmem>>, vector<1x2048xf32>,
    return
  }
  func.func @transform_0(%arg0: i32) -> (i32, i32) {
    %c0_i32 = arith.constant 0 : i32
    %c0_i32_0 = arith.constant 0 : i32
    return %arg0, %c0_i32 : i32, i32
  }
  func.func @transform_1(%arg0: i32) -> (i32, i32) {
    %c0_i32 = arith.constant 0 : i32
    %c0_i32_0 = arith.constant 0 : i32
    return %arg0, %c0_i32 : i32, i32
  }
}

</mosaic_0001>

<llo_original>
// kernel: tpu_custom_call.1
$region0: #{tpu_custom_call.1}
  #allocation0 [shape = 'u32[]', space=smem, size = 0x4, offset = 0x4, fixed_abs, tag = 'smem constant byte address 0x4 - core index']
  #allocation1 [shape = 'u32[144,128]{1,0:T(1,128)}', space=vmem, size = 0x12000, scoped, tag = 'internal scratch']
  %s0 = inlined_call_operand.hbm [shape: f32[1,2048], index: 0, kind: input, shape index: {}]
  %s1 = inlined_call_operand.hbm [shape: f32[1,2048], index: 1, kind: output, shape index: {}]
  %s2 = sld [smem:[#allocation0]]
  $region18: #{tpu_custom_call.1} parent=0
    _
  %s4 = ssub.s32 1, %s2
  %s5 = scalar_select 0, %s4, %s2
  $region1: #{tpu_custom_call.1} parent=0
    #allocation2 [shape = 'u8[8192]{0}', space=vmem, size = 0x2000, scoped, tag = 'input window, operand 0, single buffered']
    #allocation3 [shape = 's32[1]{0}', space=sflag, size = 0x4, scoped, tag = 'scoped memory for tpu_custom_call.1']
    #allocation4 [shape = 's32[1]{0}', space=sflag, size = 0x4, scoped, tag = 'scoped memory for tpu_custom_call.1']
    #allocation5 [shape = 'u8[8192]{0}', space=vmem, size = 0x2000, scoped, tag = 'output window, operand 0, single buffered']
    %6 = vsyncpa [#allocation3], 0
    %7 = vsyncpa [#allocation4], 0
    // Predicated region
    $region2: #{tpu_custom_call.1} parent=1 // pred_check
      _
    $region3: #{tpu_custom_call.1} parent=1 // pred_check_branch
      %9 = sbr.rel (0) target = $region5
    $region4: #{tpu_custom_call.1} parent=1 // pred_region
      %s11 = ssub.s32 256, 256
      %12 = vsyncadd [#allocation3], %s11
      %s14 = sshll.u32 [#allocation2], 4
      %s15 = int_to_ptr.vmem [resolvable:$true] %s14
      %17 = dma.hbm_to_vmem [thread:$0]  %s0, 256, %s15, [#allocation3]
    $region5: #{tpu_custom_call.1} parent=1 // pred_fallthru
      _
    // Predicated region
    $region6: #{tpu_custom_call.1} parent=1 // pred_check
      _
    $region7: #{tpu_custom_call.1} parent=1 // pred_check_branch
      %19 = sbr.rel (0) target = $region9
    $region8: #{tpu_custom_call.1} parent=1 // pred_region
      %20 = dma.done [#allocation3], 256
    $region9: #{tpu_custom_call.1} parent=1 // pred_fallthru
      _
    %v21 = vld [vmem:[#allocation2] sm:$0xff]
    %v22 = vld [vmem:[#allocation2 + $0x8] sm:$0xff]
    %23 = vst [vmem:[#allocation5] sm:$0xff] %v21
    %24 = vst [vmem:[#allocation5 + $0x8] sm:$0xff] %v22
    // Predicated region
    $region10: #{tpu_custom_call.1} parent=1 // pred_check
      _
    $region11: #{tpu_custom_call.1} parent=1 // pred_check_branch
      %26 = sbr.rel (0) target = $region13
    $region12: #{tpu_custom_call.1} parent=1 // pred_region
      %s28 = ssub.s32 256, 256
      %29 = vsyncadd [#allocation4], %s28
      %s31 = sshll.u32 [#allocation5], 4
      %s32 = int_to_ptr.vmem [resolvable:$true] %s31
      %34 = dma.vmem_to_hbm [thread:$0]  %s32, 256, %s1, [#allocation4]
    $region13: #{tpu_custom_call.1} parent=1 // pred_fallthru
      _
    // Predicated region
    $region14: #{tpu_custom_call.1} parent=1 // pred_check
      _
    $region15: #{tpu_custom_call.1} parent=1 // pred_check_branch
      %36 = sbr.rel (0) target = $region17
    $region16: #{tpu_custom_call.1} parent=1 // pred_region
      %37 = dma.done [#allocation4], 256
    $region17: #{tpu_custom_call.1} parent=1 // pred_fallthru
      _
    %38 = vsyncpa [#allocation3], 1
    %39 = vsyncpa [#allocation4], 1

</llo_original>
